<compile_context>
chip_gen: v6e
topology: v6e:2x2x1
jax: 0.10.0
libtpu: 0.0.40
codegen_flags: <defaults>
</compile_context>

<pallas_src>
from functools import partial

import jax
import jax.numpy as jnp
from jax.experimental import pallas as pl
from jax.experimental.pallas import tpu as pltpu


_SUBLANE = 8
_LANE = 128


# -----------------------------------------------------------------------------
# hardware / tiling helpers
# -----------------------------------------------------------------------------
def _vmem_capacity_bytes():
    try:
        info = pltpu.get_tpu_info()
        cap = getattr(info, "vmem_capacity_bytes", None)
        if cap:
            return int(cap)
    except Exception:
        pass
    return 64 << 20          # conservative: v7x has 64 MiB per TensorCore


def _pick_tiles(BC, S, dt_size, budget_bytes):
    """(bc_tile, tile_s) for the general 2-pass path.

    VMEM model (pass 2 is the binding pass): x-in + out tiles, double-buffered
    -> 4 * bc_tile * tile_s * dt bytes.  The (bc_tile, 1) scale / pooled blocks
    are negligible.  Prefer wide lane tiles, then grow the sublane tile, then
    spend any leftover budget on even wider lane tiles.
    """
    per_stream = max(budget_bytes // 4, _SUBLANE * _LANE * dt_size)

    tile_s = S if S <= 4096 else 4096                 # lane tile (full S or mult of 128)
    max_bc = per_stream // (tile_s * dt_size)
    if BC <= max_bc:
        bc_tile = BC
    else:
        bc_tile = max(_SUBLANE, (max_bc // _SUBLANE) * _SUBLANE)
        if bc_tile * tile_s * dt_size > per_stream:   # tiny budget: shrink lanes too
            tile_s = max(_LANE, (per_stream // (bc_tile * dt_size) // _LANE) * _LANE)

    # Whole BC extent fits -> widen the lane tile with the leftover budget.
    if bc_tile == BC and tile_s < S:
        grown = (per_stream // (bc_tile * dt_size) // _LANE) * _LANE
        tile_s = min(S, max(tile_s, grown))
    return bc_tile, tile_s


# -----------------------------------------------------------------------------
# kernels
# -----------------------------------------------------------------------------
def _fused_kernel(x_ref, w1t_ref, b1_ref, w2t_ref, b2_ref, o_ref, *, inv_s):
    """Fast path: one (1, C, S) batch slab resident in VMEM; pool + FC stack +
    channel multiply fused.  Batch grid axis is 'parallel' (megacore on v7x)."""
    x = x_ref[...]                                                    # (1, C, S)
    g = jnp.sum(x.astype(jnp.float32), axis=-1) * inv_s               # (1, C)
    h = jnp.dot(g, w1t_ref[...], preferred_element_type=jnp.float32) + b1_ref[...]
    h = jnp.maximum(h, 0.0)                                           # FC1 + ReLU
    s = jnp.dot(h, w2t_ref[...], preferred_element_type=jnp.float32) + b2_ref[...]
    scale = jax.nn.sigmoid(s)                                         # FC2 + Sigmoid
    o_ref[...] = (x * scale[:, :, None]).astype(o_ref.dtype)


def _pool_kernel(x_ref, sum_ref, *, s_total, tile_s, ragged_s):
    """Pass 1: spatial sum per (batch*channel) row.

    Each (bc_tile, tile_s) block is reduced with column-wise VPU adds plus one
    cross-lane reduce (hidden under the HBM-bound pipeline) and accumulated into
    the resident (bc_tile, 1) output block across the 'arbitrary' spatial axis.
    The partial last lane tile (ragged S) is masked before summing.
    """
    si = pl.program_id(1)
    x = x_ref[...].astype(jnp.float32)
    if ragged_s:
        lane = jax.lax.broadcasted_iota(jnp.int32, x.shape, 1)
        x = jnp.where(lane < (s_total - si * tile_s), x, 0.0)
    part = jnp.sum(x, axis=-1, keepdims=True)                         # (bc_tile, 1)

    @pl.when(si == 0)
    def _():
        sum_ref[...] = part

    @pl.when(si != 0)
    def _():
        sum_ref[...] = sum_ref[...] + part


def _scale_kernel(scale_ref, x_ref, o_ref):
    """Pass 2: out = scale * x.  scale is a (bc_tile, 1) f32 block, lane-broadcast
    in-register; only x and out move through HBM."""
    o_ref[...] = (x_ref[...] * scale_ref[...]).astype(o_ref.dtype)


# -----------------------------------------------------------------------------
# wrapper
# -----------------------------------------------------------------------------
def attention_se_ca(x, w1, b1, w2, b2, *, bc_tile=None, tile_s=None,
                    force_general=False):
    """SE channel attention. x: (B, C, D, H, W); w*: (C, C), b*: (C,) (nn.Linear)."""
    B, C, D, H, W = x.shape
    S = D * H * W
    BC = B * C
    inv_s = 1.0 / S
    dt = jnp.dtype(x.dtype).itemsize

    phys = _vmem_capacity_bytes()
    vmem_limit = int(min(phys * 3 // 4, 96 << 20))

    w1t = w1.T
    w2t = w2.T

    # ---------------- fast path: per-batch fused, pipelined, parallel ----------
    Cp = -(-C // _SUBLANE) * _SUBLANE
    Sp = -(-S // _LANE) * _LANE
    slab = Cp * Sp
    fast_need = (4 * slab * dt                     # x-in + out slabs, double-buffered
                 + 2 * slab * 4                    # in-kernel f32 working headroom
                 + 4 * C * C * 4 + 8 * C * 4)      # weights / biases (double-buffered)
    if (not force_general) and fast_need <= min(phys // 2, 48 << 20):
        out = pl.pallas_call(
            partial(_fused_kernel, inv_s=inv_s),
            out_shape=jax.ShapeDtypeStruct((B, C, S), x.dtype),
            grid_spec=pltpu.PrefetchScalarGridSpec(
                num_scalar_prefetch=0,
                grid=(B,),
                in_specs=[
                    pl.BlockSpec((1, C, S), lambda b: (b, 0, 0)),
                    pl.BlockSpec((C, C), lambda b: (0, 0)),
                    pl.BlockSpec((1, C), lambda b: (0, 0)),
                    pl.BlockSpec((C, C), lambda b: (0, 0)),
                    pl.BlockSpec((1, C), lambda b: (0, 0)),
                ],
                out_specs=pl.BlockSpec((1, C, S), lambda b: (b, 0, 0)),
            ),
            compiler_params=pltpu.CompilerParams(
                dimension_semantics=("parallel",),
                vmem_limit_bytes=vmem_limit,
            ),
        )(x.reshape(B, C, S), w1t, b1.reshape(1, C), w2t, b2.reshape(1, C))
        return out.reshape(B, C, D, H, W)

    # ---------------- general path: pool -> (jnp) FC -> broadcast multiply -----
    xf = x.reshape(BC, S)

    auto_bc, auto_s = _pick_tiles(BC, S, dt, min(phys // 4, 24 << 20))
    bc_tile = auto_bc if bc_tile is None else min(int(bc_tile), BC)
    tile_s = auto_s if tile_s is None else min(int(tile_s), S)
    if not (bc_tile == BC or bc_tile % _SUBLANE == 0):
        raise ValueError(f"bc_tile={bc_tile} must be a multiple of 8 or equal BC={BC}")
    if not (tile_s == S or tile_s % _LANE == 0):
        raise ValueError(f"tile_s={tile_s} must be a multiple of 128 or equal S={S}")

    n_bc = pl.cdiv(BC, bc_tile)
    n_s = pl.cdiv(S, tile_s)
    ragged_s = (S % tile_s) != 0

    # Pass 1: spatial sum per row -> (BC, 1) f32.  BC axis parallel (megacore),
    # spatial reduction axis arbitrary and last.
    pooled = pl.pallas_call(
        partial(_pool_kernel, s_total=S, tile_s=tile_s, ragged_s=ragged_s),
        out_shape=jax.ShapeDtypeStruct((BC, 1), jnp.float32),
        grid_spec=pltpu.PrefetchScalarGridSpec(
            num_scalar_prefetch=0,
            grid=(n_bc, n_s),
            in_specs=[pl.BlockSpec((bc_tile, tile_s), lambda bc, s: (bc, s))],
            out_specs=pl.BlockSpec((bc_tile, 1), lambda bc, s: (bc, 0)),
        ),
        compiler_params=pltpu.CompilerParams(
            dimension_semantics=("parallel", "arbitrary"),
            vmem_limit_bytes=vmem_limit,
        ),
    )(xf)

    # Tiny FC stack in plain jnp: O(B*C^2) flops, negligible next to the HBM-bound
    # passes (shapes small enough to care about latency take the fused fast path).
    # TODO(synk): fold FC1/ReLU/FC2/sigmoid into the last grid step of pass 1
    # (needs bc_tile aligned to C, or a sublane->lane relayout of the pooled column)
    # to shave a few microseconds of dispatch latency on medium shapes.
    g = pooled.reshape(B, C) * inv_s
    h = jnp.maximum(jnp.dot(g, w1t, preferred_element_type=jnp.float32) + b1, 0.0)
    scale = jax.nn.sigmoid(jnp.dot(h, w2t, preferred_element_type=jnp.float32) + b2)
    scale = scale.reshape(BC, 1).astype(jnp.float32)

    # Pass 2: out = scale * x.  No lane-replicated scale; both grid axes parallel.
    out = pl.pallas_call(
        _scale_kernel,
        out_shape=jax.ShapeDtypeStruct((BC, S), x.dtype),
        grid_spec=pltpu.PrefetchScalarGridSpec(
            num_scalar_prefetch=0,
            grid=(n_bc, n_s),
            in_specs=[
                pl.BlockSpec((bc_tile, 1), lambda bc, s: (bc, 0)),       # scale col
                pl.BlockSpec((bc_tile, tile_s), lambda bc, s: (bc, s)),  # x tile
            ],
            out_specs=pl.BlockSpec((bc_tile, tile_s), lambda bc, s: (bc, s)),
        ),
        compiler_params=pltpu.CompilerParams(
            dimension_semantics=("parallel", "parallel"),
            vmem_limit_bytes=vmem_limit,
        ),
    )(scale, xf)

    return out.reshape(B, C, D, H, W)


if __name__ == "__main__":
    key = jax.random.PRNGKey(0)
    kx, k1, k2, k3, k4, kx2 = jax.random.split(key, 6)

    def ref_fn(x, w1, b1, w2, b2):
        g = jnp.mean(x, axis=(2, 3, 4))
        h = jnp.maximum(g @ w1.T + b1, 0.0)
        s = jax.nn.sigmoid(h @ w2.T + b2)
        return s[:, :, None, None, None] * x

    B, C = 2, 8
    bound = 1.0 / (C ** 0.5)
    w1 = jax.random.uniform(k1, (C, C), jnp.float32, -bound, bound)
    b1 = jax.random.uniform(k2, (C,), jnp.float32, -bound, bound)
    w2 = jax.random.uniform(k3, (C, C), jnp.float32, -bound, bound)
    b2 = jax.random.uniform(k4, (C,), jnp.float32, -bound, bound)

    # Case 1: cube volume (S = 512) -> fast fused path + both general variants.
    x = jax.random.normal(kx, (B, C, 8, 8, 8), jnp.float32)
    ref = ref_fn(x, w1, b1, w2, b2)
    out_fast = jax.block_until_ready(attention_se_ca(x, w1, b1, w2, b2))
    out_gen = jax.block_until_ready(
        attention_se_ca(x, w1, b1, w2, b2, force_general=True))
    out_gen_tiled = jax.block_until_ready(
        attention_se_ca(x, w1, b1, w2, b2, force_general=True, bc_tile=8, tile_s=128))
    assert out_fast.shape == x.shape and out_fast.dtype == x.dtype
    assert jnp.allclose(out_fast, ref, atol=1e-5, rtol=1e-5)
    assert jnp.allclose(out_gen, ref, atol=1e-5, rtol=1e-5)
    assert jnp.allclose(out_gen_tiled, ref, atol=1e-5, rtol=1e-5)

    # Case 2: ragged spatial extent (S = 5*6*7 = 210) -> masked last lane tile in
    # the general path and a non-128-multiple slab in the fast path.
    x2 = jax.random.normal(kx2, (B, C, 5, 6, 7), jnp.float32)
    ref2 = ref_fn(x2, w1, b1, w2, b2)
    out2_fast = jax.block_until_ready(attention_se_ca(x2, w1, b1, w2, b2))
    out2_gen = jax.block_until_ready(
        attention_se_ca(x2, w1, b1, w2, b2, force_general=True, bc_tile=8, tile_s=128))
    assert jnp.allclose(out2_fast, ref2, atol=1e-5, rtol=1e-5)
    assert jnp.allclose(out2_gen, ref2, atol=1e-5, rtol=1e-5)

    print("KERNEL_OK")
</pallas_src>

<mosaic_0001>
module attributes {stable_mosaic.version = 11 : i64} {
  func.func @_fused_kernel(%arg0: i32, %arg1: memref<1x8x512xf32, #tpu.memory_space<vmem>>, %arg2: memref<8x8xf32, #tpu.memory_space<vmem>>, %arg3: memref<1x8xf32, #tpu.memory_space<vmem>>, %arg4: memref<8x8xf32, #tpu.memory_space<vmem>>, %arg5: memref<1x8xf32, #tpu.memory_space<vmem>>, %arg6: memref<1x8x512xf32, #tpu.memory_space<vmem>>) attributes {dimension_semantics = [#tpu.dimension_semantics<parallel>], iteration_bounds = array<i64: 2>, scalar_prefetch = 0 : i64, scratch_operands = 0 : i64, tpu.core_type = #tpu.core_type<tc>, window_params = [{transform_indices = @transform_0, window_bounds = array<i64: 1, 8, 512>}, {pipeline_mode = #tpu.pipeline_mode<synchronous>, transform_indices = @transform_1, window_bounds = array<i64: 8, 8>}, {pipeline_mode = #tpu.pipeline_mode<synchronous>, transform_indices = @transform_2, window_bounds = array<i64: 1, 8>}, {pipeline_mode = #tpu.pipeline_mode<synchronous>, transform_indices = @transform_3, window_bounds = array<i64: 8, 8>}, {pipeline_mode = #tpu.pipeline_mode<synchronous>, transform_indices = @transform_4, window_bounds = array<i64: 1, 8>}, {transform_indices = @transform_5, window_bounds = array<i64: 1, 8, 512>}]} {
    %c0 = arith.constant 0 : index
    %c0_0 = arith.constant 0 : index
    %c0_1 = arith.constant 0 : index
    %0 = vector.load %arg1[%c0, %c0_0, %c0_1] : memref<1x8x512xf32, #tpu.memory_space<vmem>>, vector<1x8x512xf32>
    %cst = arith.constant dense<0.000000e+00> : vector<1x8xf32>
    %1 = vector.multi_reduction <add>, %0, %cst [2] : vector<1x8x512xf32> to vector<1x8xf32>
    %cst_2 = arith.constant 0.001953125 : f32
    %2 = vector.broadcast %cst_2 : f32 to vector<1x8xf32>
    %3 = arith.mulf %1, %2 : vector<1x8xf32>
    %c0_3 = arith.constant 0 : index
    %c0_4 = arith.constant 0 : index
    %4 = vector.load %arg2[%c0_3, %c0_4] : memref<8x8xf32, #tpu.memory_space<vmem>>, vector<8x8xf32>
    %cst_5 = arith.constant dense<0.000000e+00> : vector<1x8xf32>
    %5 = tpu.matmul %3, %4, %cst_5 {dimension_numbers = #tpu.dot_dimension_numbers<[1], [0], [0], [1], [0, 0, 1, 1], [], []>} : vector<1x8xf32>, vector<8x8xf32>, vector<1x8xf32> -> vector<1x8xf32>
    %c0_6 = arith.constant 0 : index
    %c0_7 = arith.constant 0 : index
    %6 = vector.load %arg3[%c0_6, %c0_7] : memref<1x8xf32, #tpu.memory_space<vmem>>, vector<1x8xf32>
    %7 = arith.addf %5, %6 : vector<1x8xf32>
    %cst_8 = arith.constant 0.000000e+00 : f32
    %8 = vector.broadcast %cst_8 : f32 to vector<1x8xf32>
    %9 = arith.maximumf %7, %8 : vector<1x8xf32>
    %c0_9 = arith.constant 0 : index
    %c0_10 = arith.constant 0 : index
    %10 = vector.load %arg4[%c0_9, %c0_10] : memref<8x8xf32, #tpu.memory_space<vmem>>, vector<8x8xf32>
    %cst_11 = arith.constant dense<0.000000e+00> : vector<1x8xf32>
    %11 = tpu.matmul %9, %10, %cst_11 {dimension_numbers = #tpu.dot_dimension_numbers<[1], [0], [0], [1], [0, 0, 1, 1], [], []>} : vector<1x8xf32>, vector<8x8xf32>, vector<1x8xf32> -> vector<1x8xf32>
    %c0_12 = arith.constant 0 : index
    %c0_13 = arith.constant 0 : index
    %12 = vector.load %arg5[%c0_12, %c0_13] : memref<1x8xf32, #tpu.memory_space<vmem>>, vector<1x8xf32>
    %13 = arith.addf %11, %12 : vector<1x8xf32>
    %14 = arith.negf %13 : vector<1x8xf32>
    %15 = math.exp %14 : vector<1x8xf32>
    %cst_14 = arith.constant 1.000000e+00 : f32
    %16 = vector.broadcast %cst_14 : f32 to vector<1x8xf32>
    %17 = arith.addf %16, %15 : vector<1x8xf32>
    %18 = arith.divf %16, %17 : vector<1x8xf32>
    %19 = vector.shape_cast %18 : vector<1x8xf32> to vector<1x8x1xf32>
    %20 = vector.broadcast %19 : vector<1x8x1xf32> to vector<1x8x512xf32>
    %21 = arith.mulf %0, %20 : vector<1x8x512xf32>
    %c0_15 = arith.constant 0 : index
    %c0_16 = arith.constant 0 : index
    %c0_17 = arith.constant 0 : index
    %22 = vector.load %arg6[%c0_15, %c0_16, %c0_17] : memref<1x8x512xf32, #tpu.memory_space<vmem>>, vector<1x8x512xf32>
    tpu.vector_store %arg6[%c0_15, %c0_16, %c0_17], %21 {strides = array<i32>} : memref<1x8x512xf32, #tpu.memory_space<vmem>>, vector<1x8x512xf32>,
    return
  }
  func.func @transform_0(%arg0: i32) -> (i32, i32, i32) {
    %c0_i32 = arith.constant 0 : i32
    %c0_i32_0 = arith.constant 0 : i32
    %c0_i32_1 = arith.constant 0 : i32
    return %arg0, %c0_i32, %c0_i32_0 : i32, i32, i32
  }
  func.func @transform_1(%arg0: i32) -> (i32, i32) {
    %c0_i32 = arith.constant 0 : i32
    %c0_i32_0 = arith.constant 0 : i32
    %c0_i32_1 = arith.constant 0 : i32
    return %c0_i32, %c0_i32_0 : i32, i32
  }
  func.func @transform_2(%arg0: i32) -> (i32, i32) {
    %c0_i32 = arith.constant 0 : i32
    %c0_i32_0 = arith.constant 0 : i32
    %c0_i32_1 = arith.constant 0 : i32
    return %c0_i32, %c0_i32_0 : i32, i32
  }
  func.func @transform_3(%arg0: i32) -> (i32, i32) {
    %c0_i32 = arith.constant 0 : i32
    %c0_i32_0 = arith.constant 0 : i32
    %c0_i32_1 = arith.constant 0 : i32
    return %c0_i32, %c0_i32_0 : i32, i32
  }
  func.func @transform_4(%arg0: i32) -> (i32, i32) {
    %c0_i32 = arith.constant 0 : i32
    %c0_i32_0 = arith.constant 0 : i32
    %c0_i32_1 = arith.constant 0 : i32
    return %c0_i32, %c0_i32_0 : i32, i32
  }
  func.func @transform_5(%arg0: i32) -> (i32, i32, i32) {
    %c0_i32 = arith.constant 0 : i32
    %c0_i32_0 = arith.constant 0 : i32
    %c0_i32_1 = arith.constant 0 : i32
    return %arg0, %c0_i32, %c0_i32_0 : i32, i32, i32
  }
}

</mosaic_0001>

<llo_original>
// kernel: tpu_custom_call.1
$region0: #{tpu_custom_call.1}
  #allocation0 [shape = 'u32[]', space=smem, size = 0x4, offset = 0x4, fixed_abs, tag = 'smem constant byte address 0x4 - core index']
  #allocation1 [shape = 'u32[144,128]{1,0:T(1,128)}', space=vmem, size = 0x12000, scoped, tag = 'internal scratch']
  %s0 = inlined_call_operand.hbm [shape: f32[2,8,512], index: 0, kind: input, shape index: {}]
  %s1 = inlined_call_operand.hbm [shape: f32[8,8], index: 1, kind: input, shape index: {}]
  %s2 = inlined_call_operand.vmem [shape: f32[1,8], index: 2, kind: input, shape index: {}]
  %s3 = inlined_call_operand.hbm [shape: f32[8,8], index: 3, kind: input, shape index: {}]
  %s4 = inlined_call_operand.vmem [shape: f32[1,8], index: 4, kind: input, shape index: {}]
  %s5 = inlined_call_operand.hbm [shape: f32[2,8,512], index: 5, kind: output, shape index: {}]
  %s6 = sld [smem:[#allocation0]]
  $region65: #{tpu_custom_call.1} parent=0
    _
  %s8 = ssub.s32 1, %s6
  %s9 = scalar_select 0, %s8, %s6
  $region1: #{tpu_custom_call.1} parent=0
    #allocation2 [shape = 'u8[32768]{0}', space=vmem, size = 0x8000, scoped, tag = 'input window, operand 0']
    #allocation3 [shape = 's32[2]{0}', space=sflag, size = 0x8, scoped, tag = 'scoped memory for tpu_custom_call.1']
    #allocation4 [shape = 's32[2]{0}', space=sflag, size = 0x8, scoped, tag = 'scoped memory for tpu_custom_call.1']
    #allocation5 [shape = 'u8[4096]{0}', space=vmem, size = 0x1000, scoped, tag = 'input window, operand 1, single buffered']
    #allocation6 [shape = 's32[1]{0}', space=sflag, size = 0x4, scoped, tag = 'scoped memory for tpu_custom_call.1']
    #allocation7 [shape = 'u8[4096]{0}', space=vmem, size = 0x1000, scoped, tag = 'input window, operand 3, single buffered']
    #allocation8 [shape = 'u8[32768]{0}', space=vmem, size = 0x8000, scoped, tag = 'output window, operand 0']
    %10 = vsyncpa [#allocation3], 0
    %s11 = scalar_lea.sflag [#allocation3], 1
    %12 = vsyncpa %s11, 0
    %13 = vsyncpa [#allocation6], 0
    %14 = vsyncpa [#allocation4], 0
    %s15 = scalar_lea.sflag [#allocation4], 1
    %16 = vsyncpa %s15, 0
    loop: start=0, step=1, limit=4
    $region2: #{tpu_custom_call.1} parent=1 // loop_pre_header
      _
    $region3: #{tpu_custom_call.1} parent=1 // loop_header
      %s18 = sphi 0, %s22
      %p19 = scmp.ge.s32.totalorder %s18, 4
      %s28 = sphi 0, %s30
      %s31 = sphi 0, %s28
      %s32 = sphi 0, %s31
      %s48 = sphi 0, %s32
      %s52 = sphi 0, %s52
      %s54 = sphi 0, %s52
      %s55 = sphi 0, %s54
      %s69 = sphi 0, %s55
      %s73 = sphi 0, %s73
      %s75 = sphi 0, %s73
      %s76 = sphi 0, %s75
      %s90 = sphi 0, %s76
      %s94 = sphi 0, %s94
      %s96 = sphi 0, %s94
      %s97 = sphi 0, %s96
      %s111 = sphi 0, %s97
      %s115 = sphi 0, %s115
      %s117 = sphi 0, %s115
      %s118 = sphi 0, %s117
      %s132 = sphi 0, %s118
      %s138 = sphi 0, %s140
      %s141 = sphi 0, %s138
      %s142 = sphi 0, %s141
      %s158 = sphi 0, %s142
    $region4: #{tpu_custom_call.1} parent=1 // loop_header_branch
      %21 = sbr.rel (%p19) target = $region8
    $region5: #{tpu_custom_call.1} parent=1 // loop_body
      %s23 = ssub.s32 %s18, 1
      %s24 = ssub.s32 %s18, 2
      %s25 = sadd.s32 %s18, 1
      %s26 = ssub.s32 %s18, %s25
      %p27 = scmp.eq.s32.totalorder %s26, 0
      %s29 = sadd.s32 %s28, 1
      %s30 = scalar_select %p27, %s28, %s29
      %p33 = pneg %p27
      %p34 = scmp.eq.s32.totalorder %s18, 1
      %p35 = por %p33, %p34
      %p36 = scmp.ne.s32.totalorder %s28, %s31
      %p37 = scmp.eq.s32.totalorder %s18, 0
      %p38 = por %p36, %p37
      %p39 = scmp.ne.s32.totalorder %s28, %s31
      %p40 = scmp.eq.s32.totalorder %s23, 1
      %p41 = por %p39, %p40
      %p42 = scmp.ne.s32.totalorder %s31, %s32
      %p43 = scmp.eq.s32.totalorder %s23, 0
      %p44 = por %p42, %p43
      %p45 = scmp.ne.s32.totalorder %s31, %s32
      %p46 = scmp.eq.s32.totalorder %s24, 1
      %p47 = por %p45, %p46
      %p49 = scmp.ne.s32.totalorder %s32, %s48
      %p50 = scmp.eq.s32.totalorder %s24, 0
      %p51 = por %p49, %p50
      %s53 = sadd.s32 %s52, 1
      %p56 = scmp.eq.s32.totalorder %s18, 1
      %p57 = scmp.ne.s32.totalorder %s52, %s54
      %p58 = scmp.eq.s32.totalorder %s18, 0
      %p59 = por %p57, %p58
      %p60 = scmp.ne.s32.totalorder %s52, %s54
      %p61 = scmp.eq.s32.totalorder %s23, 1
      %p62 = por %p60, %p61
      %p63 = scmp.ne.s32.totalorder %s54, %s55
      %p64 = scmp.eq.s32.totalorder %s23, 0
      %p65 = por %p63, %p64
      %p66 = scmp.ne.s32.totalorder %s54, %s55
      %p67 = scmp.eq.s32.totalorder %s24, 1
      %p68 = por %p66, %p67
      %p70 = scmp.ne.s32.totalorder %s55, %s69
      %p71 = scmp.eq.s32.totalorder %s24, 0
      %p72 = por %p70, %p71
      %s74 = sadd.s32 %s73, 1
      %p77 = scmp.eq.s32.totalorder %s18, 1
      %p78 = scmp.ne.s32.totalorder %s73, %s75
      %p79 = scmp.eq.s32.totalorder %s18, 0
      %p80 = por %p78, %p79
      %p81 = scmp.ne.s32.totalorder %s73, %s75
      %p82 = scmp.eq.s32.totalorder %s23, 1
      %p83 = por %p81, %p82
      %p84 = scmp.ne.s32.totalorder %s75, %s76
      %p85 = scmp.eq.s32.totalorder %s23, 0
      %p86 = por %p84, %p85
      %p87 = scmp.ne.s32.totalorder %s75, %s76
      %p88 = scmp.eq.s32.totalorder %s24, 1
      %p89 = por %p87, %p88
      %p91 = scmp.ne.s32.totalorder %s76, %s90
      %p92 = scmp.eq.s32.totalorder %s24, 0
      %p93 = por %p91, %p92
      %s95 = sadd.s32 %s94, 1
      %p98 = scmp.eq.s32.totalorder %s18, 1
      %p99 = scmp.ne.s32.totalorder %s94, %s96
      %p100 = scmp.eq.s32.totalorder %s18, 0
      %p101 = por %p99, %p100
      %p102 = scmp.ne.s32.totalorder %s94, %s96
      %p103 = scmp.eq.s32.totalorder %s23, 1
      %p104 = por %p102, %p103
      %p105 = scmp.ne.s32.totalorder %s96, %s97
      %p106 = scmp.eq.s32.totalorder %s23, 0
      %p107 = por %p105, %p106
      %p108 = scmp.ne.s32.totalorder %s96, %s97
      %p109 = scmp.eq.s32.totalorder %s24, 1
      %p110 = por %p108, %p109
      %p112 = scmp.ne.s32.totalorder %s97, %s111
      %p113 = scmp.eq.s32.totalorder %s24, 0
      %p114 = por %p112, %p113
      %s116 = sadd.s32 %s115, 1
      %p119 = scmp.eq.s32.totalorder %s18, 1
      %p120 = scmp.ne.s32.totalorder %s115, %s117
      %p121 = scmp.eq.s32.totalorder %s18, 0
      %p122 = por %p120, %p121
      %p123 = scmp.ne.s32.totalorder %s115, %s117
      %p124 = scmp.eq.s32.totalorder %s23, 1
      %p125 = por %p123, %p124
      %p126 = scmp.ne.s32.totalorder %s117, %s118
      %p127 = scmp.eq.s32.totalorder %s23, 0
      %p128 = por %p126, %p127
      %p129 = scmp.ne.s32.totalorder %s117, %s118
      %p130 = scmp.eq.s32.totalorder %s24, 1
      %p131 = por %p129, %p130
      %p133 = scmp.ne.s32.totalorder %s118, %s132
      %p134 = scmp.eq.s32.totalorder %s24, 0
      %p135 = por %p133, %p134
      %s136 = ssub.s32 %s18, %s25
      %p137 = scmp.eq.s32.totalorder %s136, 0
      %s139 = sadd.s32 %s138, 1
      %s140 = scalar_select %p137, %s138, %s139
      %p143 = pneg %p137
      %p144 = scmp.eq.s32.totalorder %s18, 1
      %p145 = por %p143, %p144
      %p146 = scmp.ne.s32.totalorder %s138, %s141
      %p147 = scmp.eq.s32.totalorder %s18, 0
      %p148 = por %p146, %p147
      %p149 = scmp.ne.s32.totalorder %s138, %s141
      %p150 = scmp.eq.s32.totalorder %s23, 1
      %p151 = por %p149, %p150
      %p152 = scmp.ne.s32.totalorder %s141, %s142
      %p153 = scmp.eq.s32.totalorder %s23, 0
      %p154 = por %p152, %p153
      %p155 = scmp.ne.s32.totalorder %s141, %s142
      %p156 = scmp.eq.s32.totalorder %s24, 1
      %p157 = por %p155, %p156
      %p159 = scmp.ne.s32.totalorder %s142, %s158
      %p160 = scmp.eq.s32.totalorder %s24, 0
      %p161 = por %p159, %p160
      %p162 = scmp.le.s32.totalorder 1, %s18
      %p163 = scmp.lt.s32.totalorder %s18, 3
      %p164 = pnand %p162, %p163
      %p165 = pneg %p164
      // Predicated region
      $region9: #{tpu_custom_call.1} parent=5 // pred_check
        _
      $region10: #{tpu_custom_call.1} parent=5 // pred_check_branch
        %167 = sbr.rel (%p164) target = $region12
      $region11: #{tpu_custom_call.1} parent=5 // pred_region
        %s168 = ssub.s32 %s18, 1
        // Predicated region
        $region13: #{tpu_custom_call.1} parent=11 // pred_check
          %p169 = pneg %p65
        $region14: #{tpu_custom_call.1} parent=11 // pred_check_branch
          %171 = sbr.rel (%p169) target = $region16
        $region15: #{tpu_custom_call.1} parent=11 // pred_region
          %s173 = ssub.s32 128, 128
          %174 = vsyncadd [#allocation6], %s173
          %s176 = sshll.u32 [#allocation5], 4
          %s177 = int_to_ptr.vmem [resolvable:$true] %s176
          %179 = dma.hbm_to_vmem [thread:$0]  %s1, 128, %s177, [#allocation6]
        $region16: #{tpu_custom_call.1} parent=11 // pred_fallthru
          _
        // Predicated region
        $region17: #{tpu_custom_call.1} parent=11 // pred_check
          %p180 = pneg %p86
        $region18: #{tpu_custom_call.1} parent=11 // pred_check_branch
          %182 = sbr.rel (%p180) target = $region20
        $region19: #{tpu_custom_call.1} parent=11 // pred_region
          _
        $region20: #{tpu_custom_call.1} parent=11 // pred_fallthru
          _
        // Predicated region
        $region21: #{tpu_custom_call.1} parent=11 // pred_check
          %p183 = pneg %p107
        $region22: #{tpu_custom_call.1} parent=11 // pred_check_branch
          %185 = sbr.rel (%p183) target = $region24
        $region23: #{tpu_custom_call.1} parent=11 // pred_region
          %s187 = ssub.s32 128, 128
          %188 = vsyncadd [#allocation6], %s187
          %s190 = sshll.u32 [#allocation7], 4
          %s191 = int_to_ptr.vmem [resolvable:$true] %s190
          %193 = dma.hbm_to_vmem [thread:$0]  %s3, 128, %s191, [#allocation6]
        $region24: #{tpu_custom_call.1} parent=11 // pred_fallthru
          _
        // Predicated region
        $region25: #{tpu_custom_call.1} parent=11 // pred_check
          %p194 = pneg %p128
        $region26: #{tpu_custom_call.1} parent=11 // pred_check_branch
          %196 = sbr.rel (%p194) target = $region28
        $region27: #{tpu_custom_call.1} parent=11 // pred_region
          _
        $region28: #{tpu_custom_call.1} parent=11 // pred_fallthru
          _
      $region12: #{tpu_custom_call.1} parent=5 // pred_fallthru
        _
      %p197 = scmp.lt.s32.totalorder %s18, 2
      // Predicated region
      $region29: #{tpu_custom_call.1} parent=5 // pred_check
        %p198 = pneg %p197
      $region30: #{tpu_custom_call.1} parent=5 // pred_check_branch
        %200 = sbr.rel (%p198) target = $region32
      $region31: #{tpu_custom_call.1} parent=5 // pred_region
        // Predicated region
        $region33: #{tpu_custom_call.1} parent=31 // pred_check
          %p201 = pneg %p38
        $region34: #{tpu_custom_call.1} parent=31 // pred_check_branch
          %203 = sbr.rel (%p201) target = $region36
        $region35: #{tpu_custom_call.1} parent=31 // pred_region
          %s204 = sand.u32 %s28, 1
          %s205 = scalar_lea.sflag [#allocation3], %s204
          %s206 = sand.u32 %s28, 1
          %s207 = smul.addr %s206, 32
          %s208 = scalar_lea.vmem [#allocation2], %s207
          %s210 = ssub.s32 512, 512
          %211 = vsyncadd %s205, %s210
          %s212 = smul.addr %s18, 4
          %s213 = smul.addr %s212, 128
          %s214 = scalar_lea.hbm %s0, %s213
          %s216 = sshll.u32 %s208, 4
          %s217 = int_to_ptr.vmem [resolvable:$true] %s216
          %219 = dma.hbm_to_vmem [thread:$0]  %s214, 512, %s217, %s205
        $region36: #{tpu_custom_call.1} parent=31 // pred_fallthru
          _
      $region32: #{tpu_custom_call.1} parent=5 // pred_fallthru
        _
      %p220 = scmp.le.s32.totalorder 1, %s18
      %p221 = scmp.lt.s32.totalorder %s18, 3
      %p222 = pnand %p220, %p221
      %p223 = pneg %p222
      // Predicated region
      $region37: #{tpu_custom_call.1} parent=5 // pred_check
        _
      $region38: #{tpu_custom_call.1} parent=5 // pred_check_branch
        %225 = sbr.rel (%p222) target = $region40
      $region39: #{tpu_custom_call.1} parent=5 // pred_region
        %s226 = ssub.s32 %s18, 1
        %s227 = sand.u32 %s31, 1
        %s228 = scalar_lea.sflag [#allocation3], %s227
        %s229 = sand.u32 %s31, 1
        %s230 = smul.addr %s229, 32
        %s231 = scalar_lea.vmem [#allocation2], %s230
        // Predicated region
        $region41: #{tpu_custom_call.1} parent=39 // pred_check
          %p232 = pneg %p44
        $region42: #{tpu_custom_call.1} parent=39 // pred_check_branch
          %234 = sbr.rel (%p232) target = $region44
        $region43: #{tpu_custom_call.1} parent=39 // pred_region
          %235 = dma.done %s228, 512
        $region44: #{tpu_custom_call.1} parent=39 // pred_fallthru
          _
        // Predicated region
        $region45: #{tpu_custom_call.1} parent=39 // pred_check
          %p236 = pneg %p65
        $region46: #{tpu_custom_call.1} parent=39 // pred_check_branch
          %238 = sbr.rel (%p236) target = $region48
        $region47: #{tpu_custom_call.1} parent=39 // pred_region
          %239 = dma.done [#allocation6], 128
        $region48: #{tpu_custom_call.1} parent=39 // pred_fallthru
          _
        // Predicated region
        $region49: #{tpu_custom_call.1} parent=39 // pred_check
          %p240 = pneg %p107
        $region50: #{tpu_custom_call.1} parent=39 // pred_check_branch
          %242 = sbr.rel (%p240) target = $region52
        $region51: #{tpu_custom_call.1} parent=39 // pred_region
          %243 = dma.done [#allocation6], 128
        $region52: #{tpu_custom_call.1} parent=39 // pred_fallthru
          _
        %s244 = sand.u32 %s31, 1
        %s245 = scalar_lea.sflag [#allocation3], %s244
        %s246 = sand.u32 %s31, 1
        %s247 = smul.addr %s246, 32
        %s248 = scalar_lea.vmem [#allocation2], %s247
        %p249 = pneg %p44
        %p250 = pneg %p41
        %p251 = pneg %p65
        %p252 = pneg %p62
        %p253 = pneg %p86
        %p254 = pneg %p83
        %p255 = pneg %p107
        %p256 = pneg %p104
        %p257 = pneg %p128
        %p258 = pneg %p125
        %p259 = pneg %p154
        %p260 = pneg %p151
        %s261 = sand.u32 %s141, 1
        %s262 = scalar_lea.sflag [#allocation4], %s261
        %s263 = sand.u32 %s141, 1
        %s264 = smul.addr %s263, 32
        %s265 = scalar_lea.vmem [#allocation8], %s264
        %v266 = vld [vmem:[%s231] sm:$0xff]
        %v267 = vld [vmem:[%s231 + $0x8] sm:$0xff]
        %v268 = vld [vmem:[%s231 + $0x10] sm:$0xff]
        %v269 = vld [vmem:[%s231 + $0x18] sm:$0xff]
        %v270 = vadd.f32 %v266, %v267
        %v271 = vadd.f32 %v270, %v268
        %v272 = vadd.f32 %v271, %v269
        %273 = vadd.xlane.f32.xlu0 %v272
        %v274 = vpop.xlane.xlu0 %273
        %v275 = vmul.f32 %v274, 0.001953125
        %v276 = vld [vmem:[#allocation5] sm:$0xff]
        %v277 = vld [vmem:[%s2] sm:$0x1]
        %v279 = vlaneseq
        %v280 = vand.u32 %v279, 127
        %v281 = vlaneseq
        %v282 = vshrl.u32 %v281, 7
        %v283 = vsub.s32 %v280, %v282
        %v284 = vrot.slane %v275, %v283
        %vm285 = vcmask 64512
        %v286 = vsel %vm285, %v284, 0
        %288 = vmatprep.subr.mxu0 0.0
        %289 = vmatpush1.msra.mxu0 0.0
        %290 = vmatprep.subr.mxu0 0.0
        %291 = vmatpush1.msra.mxu0 0.0
        %292 = vmatprep.subr.mxu0 0.0
        %293 = vmatpush1.msra.mxu0 0.0
        %294 = vmatprep.subr.mxu0 0.0
        %295 = vmatpush1.msra.mxu0 0.0
        %296 = vmatprep.subr.mxu0 0.0
        %297 = vmatpush1.msra.mxu0 0.0
        %298 = vmatprep.subr.mxu0 0.0
        %299 = vmatpush1.msra.mxu0 0.0
        %300 = vmatprep.subr.mxu0 0.0
        %301 = vmatpush1.msra.mxu0 0.0
        %302 = vmatprep.subr.mxu0 0.0
        %303 = vmatpush1.msra.mxu0 0.0
        %304 = vmatprep.subr.mxu0 0.0
        %305 = vmatpush1.msra.mxu0 0.0
        %306 = vmatprep.subr.mxu0 0.0
        %307 = vmatpush1.msra.mxu0 0.0
        %308 = vmatprep.subr.mxu0 0.0
        %309 = vmatpush1.msra.mxu0 0.0
        %310 = vmatprep.subr.mxu0 0.0
        %311 = vmatpush1.msra.mxu0 0.0
        %312 = vmatprep.subr.mxu0 0.0
        %313 = vmatpush1.msra.mxu0 0.0
        %314 = vmatprep.subr.mxu0 0.0
        %315 = vmatpush1.msra.mxu0 0.0
        %316 = vmatprep.subr.mxu0 0.0
        %317 = vmatpush1.msra.mxu0 0.0
        %318 = vmatprep.subr.mxu0 0.0
        %319 = vmatpush1.msra.mxu0 %v276
        %320 = vmatprep.subr.mxu0 0.0
        %321 = vmatpush2.msra.mxu0 0.0
        %322 = vmatprep.subr.mxu0 0.0
        %323 = vmatpush2.msra.mxu0 0.0
        %324 = vmatprep.subr.mxu0 0.0
        %325 = vmatpush2.msra.mxu0 0.0
        %326 = vmatprep.subr.mxu0 0.0
        %327 = vmatpush2.msra.mxu0 0.0
        %328 = vmatprep.subr.mxu0 0.0
        %329 = vmatpush2.msra.mxu0 0.0
        %330 = vmatprep.subr.mxu0 0.0
        %331 = vmatpush2.msra.mxu0 0.0
        %332 = vmatprep.subr.mxu0 0.0
        %333 = vmatpush2.msra.mxu0 0.0
        %334 = vmatprep.subr.mxu0 0.0
        %335 = vmatpush2.msra.mxu0 0.0
        %336 = vmatprep.subr.mxu0 0.0
        %337 = vmatpush2.msra.mxu0 0.0
        %338 = vmatprep.subr.mxu0 0.0
        %339 = vmatpush2.msra.mxu0 0.0
        %340 = vmatprep.subr.mxu0 0.0
        %341 = vmatpush2.msra.mxu0 0.0
        %342 = vmatprep.subr.mxu0 0.0
        %343 = vmatpush2.msra.mxu0 0.0
        %344 = vmatprep.subr.mxu0 0.0
        %345 = vmatpush2.msra.mxu0 0.0
        %346 = vmatprep.subr.mxu0 0.0
        %347 = vmatpush2.msra.mxu0 0.0
        %348 = vmatprep.subr.mxu0 0.0
        %349 = vmatpush2.msra.mxu0 0.0
        %350 = vmatprep.subr.mxu0 0.0
        %351 = vmatpush2.msra.mxu0 0.0
        %352 = vmatprep.mubr.f32.mxu0 0.0
        %353 = vmatmul.mubr.f32.gmra.mxu0 %v286
        %v354 = vpop.f32.mrf.mxu0
        %v355 = vadd.f32 %v277, %v354
        %v356 = vpop.f32.mrf.mxu0
        %357 = vdwg.mxu0
        %v358 = vmax.f32 %v355, 0.0
        %v359 = vld [vmem:[#allocation7] sm:$0xff]
        %v360 = vld [vmem:[%s4] sm:$0x1]
        %v362 = vsel %vm285, %v358, 0
        %364 = vmatprep.subr.mxu0 0.0
        %365 = vmatpush1.msra.mxu0 0.0
        %366 = vmatprep.subr.mxu0 0.0
        %367 = vmatpush1.msra.mxu0 0.0
        %368 = vmatprep.subr.mxu0 0.0
        %369 = vmatpush1.msra.mxu0 0.0
        %370 = vmatprep.subr.mxu0 0.0
        %371 = vmatpush1.msra.mxu0 0.0
        %372 = vmatprep.subr.mxu0 0.0
        %373 = vmatpush1.msra.mxu0 0.0
        %374 = vmatprep.subr.mxu0 0.0
        %375 = vmatpush1.msra.mxu0 0.0
        %376 = vmatprep.subr.mxu0 0.0
        %377 = vmatpush1.msra.mxu0 0.0
        %378 = vmatprep.subr.mxu0 0.0
        %379 = vmatpush1.msra.mxu0 0.0
        %380 = vmatprep.subr.mxu0 0.0
        %381 = vmatpush1.msra.mxu0 0.0
        %382 = vmatprep.subr.mxu0 0.0
        %383 = vmatpush1.msra.mxu0 0.0
        %384 = vmatprep.subr.mxu0 0.0
        %385 = vmatpush1.msra.mxu0 0.0
        %386 = vmatprep.subr.mxu0 0.0
        %387 = vmatpush1.msra.mxu0 0.0
        %388 = vmatprep.subr.mxu0 0.0
        %389 = vmatpush1.msra.mxu0 0.0
        %390 = vmatprep.subr.mxu0 0.0
        %391 = vmatpush1.msra.mxu0 0.0
        %392 = vmatprep.subr.mxu0 0.0
        %393 = vmatpush1.msra.mxu0 0.0
        %394 = vmatprep.subr.mxu0 0.0
        %395 = vmatpush1.msra.mxu0 %v359
        %396 = vmatprep.subr.mxu0 0.0
        %397 = vmatpush2.msra.mxu0 0.0
        %398 = vmatprep.subr.mxu0 0.0
        %399 = vmatpush2.msra.mxu0 0.0
        %400 = vmatprep.subr.mxu0 0.0
        %401 = vmatpush2.msra.mxu0 0.0
        %402 = vmatprep.subr.mxu0 0.0
        %403 = vmatpush2.msra.mxu0 0.0
        %404 = vmatprep.subr.mxu0 0.0
        %405 = vmatpush2.msra.mxu0 0.0
        %406 = vmatprep.subr.mxu0 0.0
        %407 = vmatpush2.msra.mxu0 0.0
        %408 = vmatprep.subr.mxu0 0.0
        %409 = vmatpush2.msra.mxu0 0.0
        %410 = vmatprep.subr.mxu0 0.0
        %411 = vmatpush2.msra.mxu0 0.0
        %412 = vmatprep.subr.mxu0 0.0
        %413 = vmatpush2.msra.mxu0 0.0
        %414 = vmatprep.subr.mxu0 0.0
        %415 = vmatpush2.msra.mxu0 0.0
        %416 = vmatprep.subr.mxu0 0.0
        %417 = vmatpush2.msra.mxu0 0.0
        %418 = vmatprep.subr.mxu0 0.0
        %419 = vmatpush2.msra.mxu0 0.0
        %420 = vmatprep.subr.mxu0 0.0
        %421 = vmatpush2.msra.mxu0 0.0
        %422 = vmatprep.subr.mxu0 0.0
        %423 = vmatpush2.msra.mxu0 0.0
        %424 = vmatprep.subr.mxu0 0.0
        %425 = vmatpush2.msra.mxu0 0.0
        %426 = vmatprep.subr.mxu0 0.0
        %427 = vmatpush2.msra.mxu0 0.0
        %428 = vmatprep.mubr.f32.mxu0 0.0
        %429 = vmatmul.mubr.f32.gmra.mxu0 %v362
        %v430 = vpop.f32.mrf.mxu0
        %v431 = vadd.f32 %v360, %v430
        %v432 = vpop.f32.mrf.mxu0
        %433 = vdwg.mxu0
        %v434 = vxor.u32 %v431, 2147483648
        %v435 = vmul.f32 %v434, 1.442695
        %v436 = vpow.pop %v435
        %v437 = vadd.f32 %v436, 1.0
        %v438 = vrcp.pop %v437
        %v439 = vmul.f32 1.0, %v438
        %v440 = vlaneseq
        %v441 = vshrl.u32 %v440, 7
        %v442 = vsub.s32 0, %v441
        %v443 = vrot.slane %v439, %v442
        %445 = vbcast.lane.b32.xlu0 %v443, 256
        %v446 = vpop.permute.xlu0 %445
        %v447 = vmul.f32 %v266, %v446
        %v448 = vmul.f32 %v267, %v446
        %v449 = vmul.f32 %v268, %v446
        %v450 = vmul.f32 %v269, %v446
        %451 = vst [vmem:[%s265] sm:$0xff] %v447
        %452 = vst [vmem:[%s265 + $0x8] sm:$0xff] %v448
        %453 = vst [vmem:[%s265 + $0x10] sm:$0xff] %v449
        %454 = vst [vmem:[%s265 + $0x18] sm:$0xff] %v450
        %s455 = sand.u32 %s141, 1
        %s456 = scalar_lea.sflag [#allocation4], %s455
        %s457 = sand.u32 %s141, 1
        %s458 = smul.addr %s457, 32
        %s459 = scalar_lea.vmem [#allocation8], %s458
        // Predicated region
        $region53: #{tpu_custom_call.1} parent=39 // pred_check
          %p460 = pneg %p151
        $region54: #{tpu_custom_call.1} parent=39 // pred_check_branch
          %462 = sbr.rel (%p460) target = $region56
        $region55: #{tpu_custom_call.1} parent=39 // pred_region
          %s464 = ssub.s32 512, 512
          %465 = vsyncadd %s456, %s464
          %s466 = smul.addr %s23, 4
          %s467 = smul.addr %s466, 128
          %s468 = scalar_lea.hbm %s5, %s467
          %s470 = sshll.u32 %s459, 4
          %s471 = int_to_ptr.vmem [resolvable:$true] %s470
          %473 = dma.vmem_to_hbm [thread:$0]  %s471, 512, %s468, %s456
        $region56: #{tpu_custom_call.1} parent=39 // pred_fallthru
          _
      $region40: #{tpu_custom_call.1} parent=5 // pred_fallthru
        _
      %p474 = scmp.le.s32.totalorder 2, %s18
      // Predicated region
      $region57: #{tpu_custom_call.1} parent=5 // pred_check
        %p475 = pneg %p474
      $region58: #{tpu_custom_call.1} parent=5 // pred_check_branch
        %477 = sbr.rel (%p475) target = $region60
      $region59: #{tpu_custom_call.1} parent=5 // pred_region
        %s478 = ssub.s32 %s18, 2
        // Predicated region
        $region61: #{tpu_custom_call.1} parent=59 // pred_check
          %p479 = pneg %p157
        $region62: #{tpu_custom_call.1} parent=59 // pred_check_branch
          %481 = sbr.rel (%p479) target = $region64
        $region63: #{tpu_custom_call.1} parent=59 // pred_region
          %s482 = sand.u32 %s142, 1
          %s483 = scalar_lea.sflag [#allocation4], %s482
          %s484 = sand.u32 %s142, 1
          %s485 = smul.addr %s484, 32
          %s486 = scalar_lea.vmem [#allocation8], %s485
          %487 = dma.done %s483, 512
        $region64: #{tpu_custom_call.1} parent=59 // pred_fallthru
          _
      $region60: #{tpu_custom_call.1} parent=5 // pred_fallthru
        _
    $region6: #{tpu_custom_call.1} parent=1 // loop_footer
      %s22 = sadd.s32 1, %s18
    $region7: #{tpu_custom_call.1} parent=1 // loop_footer_branch
      %17 = sbr.rel target = $region3
    $region8: #{tpu_custom_call.1} parent=1 // loop_exit
      _
    %488 = vsyncpa [#allocation3], 1
    %s489 = scalar_lea.sflag [#allocation3], 1
    %490 = vsyncpa %s489, 1
    %491 = vsyncpa [#allocation6], 1
    %492 = vsyncpa [#allocation4], 1
    %s493 = scalar_lea.sflag [#allocation4], 1
    %494 = vsyncpa %s493, 1

</llo_original>
